<compile_context>
chip_gen: v7x
topology: tpu7x:2x2x1
jax: 0.10.0
libtpu: 0.0.40
codegen_flags: <defaults>
</compile_context>

<pallas_src>
import functools
from math import sqrt

import jax
import jax.numpy as jnp
from jax import lax
from jax.experimental import pallas as pl
from jax.experimental.pallas import tpu as pltpu


def _attention_head_kernel(h_ref, bias_ref, wqkv_ref, bqkv_ref, o_ref,
                           *, head_dim, compute_dtype):
    # h_ref:    (B, S, E)   full batch (single grid step)
    # bias_ref: (B, S, S)   additive mask bias: 0.0 or -1e9, f32
    # wqkv_ref: (E, 3H)     [Wq*scale | Wk | Wv]
    # bqkv_ref: (1, 1, 3H)  [bq*scale | bk | bv]
    # o_ref:    (B, S, H)
    h = h_ref[...].astype(compute_dtype)
    wqkv = wqkv_ref[...].astype(compute_dtype)

    # Fused QKV projection: (B, S, E) x (E, 3H) -> (B, S, 3H), f32 accumulation.
    qkv = lax.dot_general(h, wqkv,
                          dimension_numbers=(((2,), (0,)), ((), ())),
                          preferred_element_type=jnp.float32)
    qkv = qkv + bqkv_ref[...]

    q = qkv[..., :head_dim]                    # already pre-scaled by 1/sqrt(H)
    k = qkv[..., head_dim:2 * head_dim]
    v = qkv[..., 2 * head_dim:]

    # scores = q @ k^T : contract last dims, batch over dim 0 (no transpose).
    scores = lax.dot_general(q.astype(compute_dtype), k.astype(compute_dtype),
                             dimension_numbers=(((2,), (2,)), ((0,), (0,))),
                             preferred_element_type=jnp.float32)   # (B, S, S)
    scores = scores + bias_ref[...]            # masked_fill(mask==0, -1e9)

    # Numerically-stable softmax along the last axis.
    s_max = jnp.max(scores, axis=-1, keepdims=True)
    p = jnp.exp(scores - s_max)
    denom = jnp.sum(p, axis=-1, keepdims=True)
    inv = pl.reciprocal(denom, approx=True)    # EUP vrcp (free slot)
    inv = inv * (2.0 - denom * inv)            # one Newton step -> ~f32 exact
    w = p * inv

    # attn_outputs = weights @ v : (B, S, S) x (B, S, H) -> (B, S, H)
    out = lax.dot_general(w.astype(compute_dtype), v.astype(compute_dtype),
                          dimension_numbers=(((2,), (1,)), ((0,), (0,))),
                          preferred_element_type=jnp.float32)
    o_ref[...] = out.astype(o_ref.dtype)


def attention_head(hidden_state, mask, wq, bq, wk, bk, wv, bv,
                   *, compute_dtype=jnp.float32):
    """hidden_state: [B, S, E] f32; mask: [B, S, S] int (0 = masked);
    w*: [E, H] (torch weight transposed); b*: [H]."""
    B, S, E = hidden_state.shape
    H = wq.shape[1]
    scale = 1.0 / sqrt(float(H))

    # Fold the 1/sqrt(H) scale into the query projection and fuse Q/K/V.
    wqkv = jnp.concatenate([wq * scale, wk, wv], axis=1)               # (E, 3H)
    bqkv = jnp.concatenate([bq * scale, bk, bv]).reshape(1, 1, 3 * H)  # (1,1,3H)

    # Additive mask bias (replaces the in-kernel compare+select).
    mask_bias = jnp.where(mask == 0, jnp.float32(-1000000000.0),
                          jnp.float32(0.0))                            # (B, S, S)

    kernel = functools.partial(_attention_head_kernel,
                               head_dim=H, compute_dtype=compute_dtype)

    grid_spec = pltpu.PrefetchScalarGridSpec(
        num_scalar_prefetch=0,
        grid=(1,),   # single step: whole problem in one block (tiny shapes)
        in_specs=[
            pl.BlockSpec((B, S, E), lambda i: (0, 0, 0)),       # hidden_state
            pl.BlockSpec((B, S, S), lambda i: (0, 0, 0)),       # mask bias
            pl.BlockSpec((E, 3 * H), lambda i: (0, 0)),         # fused W_qkv
            pl.BlockSpec((1, 1, 3 * H), lambda i: (0, 0, 0)),   # fused b_qkv
        ],
        out_specs=pl.BlockSpec((B, S, H), lambda i: (0, 0, 0)),
    )

    return pl.pallas_call(
        kernel,
        out_shape=jax.ShapeDtypeStruct((B, S, H), hidden_state.dtype),
        grid_spec=grid_spec,
        compiler_params=pltpu.CompilerParams(
            dimension_semantics=("arbitrary",),
            vmem_limit_bytes=32 * 1024 * 1024),
    )(hidden_state, mask_bias, wqkv, bqkv)


def _reference(hidden_state, mask, wq, bq, wk, bk, wv, bv):
    q = hidden_state @ wq + bq
    k = hidden_state @ wk + bk
    v = hidden_state @ wv + bv
    scores = jnp.einsum("bqd,bkd->bqk", q, k) / sqrt(float(wq.shape[1]))
    scores = jnp.where(mask == 0, -1000000000.0, scores)
    w = jax.nn.softmax(scores, axis=-1)
    return jnp.einsum("bqk,bkd->bqd", w, v)


if __name__ == "__main__":
    B, S, E, H = 2, 8, 32, 16   # batch, seq, embed_dim, head_dim

    key = jax.random.PRNGKey(0)
    k_h, k_wq, k_bq, k_wk, k_bk, k_wv, k_bv = jax.random.split(key, 7)

    hidden_state = jax.random.normal(k_h, (B, S, E), dtype=jnp.float32)

    # deterministic "Linear" parameters (stored as [in, out] = torch weight.T)
    init = 1.0 / sqrt(float(E))
    wq = jax.random.uniform(k_wq, (E, H), jnp.float32, -init, init)
    bq = jax.random.uniform(k_bq, (H,), jnp.float32, -init, init)
    wk = jax.random.uniform(k_wk, (E, H), jnp.float32, -init, init)
    bk = jax.random.uniform(k_bk, (H,), jnp.float32, -init, init)
    wv = jax.random.uniform(k_wv, (E, H), jnp.float32, -init, init)
    bv = jax.random.uniform(k_bv, (H,), jnp.float32, -init, init)

    # causal-style mask, [B, S, S], 0 = masked position
    mask = jnp.tril(jnp.ones((S, S), jnp.int32))[None, :, :].repeat(B, axis=0)

    out = attention_head(hidden_state, mask, wq, bq, wk, bk, wv, bv)
    out = jax.block_until_ready(out)

    ref = _reference(hidden_state, mask, wq, bq, wk, bk, wv, bv)
    assert out.shape == (B, S, H)
    assert jnp.allclose(out, ref, atol=1e-5, rtol=1e-5), "mismatch vs reference"

    print("KERNEL_OK")
</pallas_src>

<mosaic_0001>
module attributes {stable_mosaic.version = 11 : i64} {
  func.func @_attention_head_kernel(%arg0: i32, %arg1: memref<2x8x32xf32, #tpu.memory_space<vmem>>, %arg2: memref<2x8x8xf32, #tpu.memory_space<vmem>>, %arg3: memref<32x48xf32, #tpu.memory_space<vmem>>, %arg4: memref<1x1x48xf32, #tpu.memory_space<vmem>>, %arg5: memref<2x8x16xf32, #tpu.memory_space<vmem>>) attributes {dimension_semantics = [#tpu.dimension_semantics<arbitrary>], iteration_bounds = array<i64: 1>, scalar_prefetch = 0 : i64, scratch_operands = 0 : i64, tpu.core_type = #tpu.core_type<tc>, window_params = [{pipeline_mode = #tpu.pipeline_mode<synchronous>, transform_indices = @transform_0, window_bounds = array<i64: 2, 8, 32>}, {pipeline_mode = #tpu.pipeline_mode<synchronous>, transform_indices = @transform_1, window_bounds = array<i64: 2, 8, 8>}, {pipeline_mode = #tpu.pipeline_mode<synchronous>, transform_indices = @transform_2, window_bounds = array<i64: 32, 48>}, {pipeline_mode = #tpu.pipeline_mode<synchronous>, transform_indices = @transform_3, window_bounds = array<i64: 1, 1, 48>}, {pipeline_mode = #tpu.pipeline_mode<synchronous>, transform_indices = @transform_4, window_bounds = array<i64: 2, 8, 16>}]} {
    %c0 = arith.constant 0 : index
    %c0_0 = arith.constant 0 : index
    %c0_1 = arith.constant 0 : index
    %0 = vector.load %arg1[%c0, %c0_0, %c0_1] : memref<2x8x32xf32, #tpu.memory_space<vmem>>, vector<2x8x32xf32>
    %c0_2 = arith.constant 0 : index
    %c0_3 = arith.constant 0 : index
    %1 = vector.load %arg3[%c0_2, %c0_3] : memref<32x48xf32, #tpu.memory_space<vmem>>, vector<32x48xf32>
    %cst = arith.constant dense<0.000000e+00> : vector<2x8x48xf32>
    %2 = tpu.matmul %0, %1, %cst {dimension_numbers = #tpu.dot_dimension_numbers<[2], [0], [0, 1], [1], [0, 0, 0, 1, 1, 1], [], []>} : vector<2x8x32xf32>, vector<32x48xf32>, vector<2x8x48xf32> -> vector<2x8x48xf32>
    %c0_4 = arith.constant 0 : index
    %c0_5 = arith.constant 0 : index
    %c0_6 = arith.constant 0 : index
    %3 = vector.load %arg4[%c0_4, %c0_5, %c0_6] : memref<1x1x48xf32, #tpu.memory_space<vmem>>, vector<1x1x48xf32>
    %4 = vector.broadcast %3 : vector<1x1x48xf32> to vector<2x8x48xf32>
    %5 = arith.addf %2, %4 : vector<2x8x48xf32>
    %6 = vector.extract_strided_slice %5 {offsets = [0, 0, 0], sizes = [2, 8, 16], strides = [1, 1, 1]} : vector<2x8x48xf32> to vector<2x8x16xf32>
    %7 = vector.extract_strided_slice %5 {offsets = [0, 0, 16], sizes = [2, 8, 16], strides = [1, 1, 1]} : vector<2x8x48xf32> to vector<2x8x16xf32>
    %8 = vector.extract_strided_slice %5 {offsets = [0, 0, 32], sizes = [2, 8, 16], strides = [1, 1, 1]} : vector<2x8x48xf32> to vector<2x8x16xf32>
    %cst_7 = arith.constant dense<0.000000e+00> : vector<2x8x8xf32>
    %9 = tpu.matmul %6, %7, %cst_7 {dimension_numbers = #tpu.dot_dimension_numbers<[2], [2], [1], [1], [0, 0, 0, 1, 1, 1], [0], [0]>} : vector<2x8x16xf32>, vector<2x8x16xf32>, vector<2x8x8xf32> -> vector<2x8x8xf32>
    %c0_8 = arith.constant 0 : index
    %c0_9 = arith.constant 0 : index
    %c0_10 = arith.constant 0 : index
    %10 = vector.load %arg2[%c0_8, %c0_9, %c0_10] : memref<2x8x8xf32, #tpu.memory_space<vmem>>, vector<2x8x8xf32>
    %11 = arith.addf %9, %10 : vector<2x8x8xf32>
    %cst_11 = arith.constant dense<0xFF800000> : vector<2x8xf32>
    %12 = vector.multi_reduction <maximumf>, %11, %cst_11 [2] : vector<2x8x8xf32> to vector<2x8xf32>
    %13 = vector.shape_cast %12 : vector<2x8xf32> to vector<2x8x1xf32>
    %14 = vector.broadcast %13 : vector<2x8x1xf32> to vector<2x8x8xf32>
    %15 = arith.subf %11, %14 : vector<2x8x8xf32>
    %16 = math.exp %15 : vector<2x8x8xf32>
    %cst_12 = arith.constant dense<0.000000e+00> : vector<2x8xf32>
    %17 = vector.multi_reduction <add>, %16, %cst_12 [2] : vector<2x8x8xf32> to vector<2x8xf32>
    %18 = vector.shape_cast %17 : vector<2x8xf32> to vector<2x8x1xf32>
    %19 = tpu.reciprocal %18 {approx = true} : vector<2x8x1xf32> -> vector<2x8x1xf32>
    %20 = arith.mulf %18, %19 : vector<2x8x1xf32>
    %cst_13 = arith.constant 2.000000e+00 : f32
    %21 = vector.broadcast %cst_13 : f32 to vector<2x8x1xf32>
    %22 = arith.subf %21, %20 : vector<2x8x1xf32>
    %23 = arith.mulf %19, %22 : vector<2x8x1xf32>
    %24 = vector.broadcast %23 : vector<2x8x1xf32> to vector<2x8x8xf32>
    %25 = arith.mulf %16, %24 : vector<2x8x8xf32>
    %cst_14 = arith.constant dense<0.000000e+00> : vector<2x8x16xf32>
    %26 = tpu.matmul %25, %8, %cst_14 {dimension_numbers = #tpu.dot_dimension_numbers<[2], [1], [1], [2], [0, 0, 0, 1, 1, 2], [0], [0]>} : vector<2x8x8xf32>, vector<2x8x16xf32>, vector<2x8x16xf32> -> vector<2x8x16xf32>
    %c0_15 = arith.constant 0 : index
    %c0_16 = arith.constant 0 : index
    %c0_17 = arith.constant 0 : index
    %27 = vector.load %arg5[%c0_15, %c0_16, %c0_17] : memref<2x8x16xf32, #tpu.memory_space<vmem>>, vector<2x8x16xf32>
    tpu.vector_store %arg5[%c0_15, %c0_16, %c0_17], %26 {strides = array<i32>} : memref<2x8x16xf32, #tpu.memory_space<vmem>>, vector<2x8x16xf32>,
    return
  }
  func.func @transform_0(%arg0: i32) -> (i32, i32, i32) {
    %c0_i32 = arith.constant 0 : i32
    %c0_i32_0 = arith.constant 0 : i32
    %c0_i32_1 = arith.constant 0 : i32
    %c0_i32_2 = arith.constant 0 : i32
    return %c0_i32, %c0_i32_0, %c0_i32_1 : i32, i32, i32
  }
  func.func @transform_1(%arg0: i32) -> (i32, i32, i32) {
    %c0_i32 = arith.constant 0 : i32
    %c0_i32_0 = arith.constant 0 : i32
    %c0_i32_1 = arith.constant 0 : i32
    %c0_i32_2 = arith.constant 0 : i32
    return %c0_i32, %c0_i32_0, %c0_i32_1 : i32, i32, i32
  }
  func.func @transform_2(%arg0: i32) -> (i32, i32) {
    %c0_i32 = arith.constant 0 : i32
    %c0_i32_0 = arith.constant 0 : i32
    %c0_i32_1 = arith.constant 0 : i32
    return %c0_i32, %c0_i32_0 : i32, i32
  }
  func.func @transform_3(%arg0: i32) -> (i32, i32, i32) {
    %c0_i32 = arith.constant 0 : i32
    %c0_i32_0 = arith.constant 0 : i32
    %c0_i32_1 = arith.constant 0 : i32
    %c0_i32_2 = arith.constant 0 : i32
    return %c0_i32, %c0_i32_0, %c0_i32_1 : i32, i32, i32
  }
  func.func @transform_4(%arg0: i32) -> (i32, i32, i32) {
    %c0_i32 = arith.constant 0 : i32
    %c0_i32_0 = arith.constant 0 : i32
    %c0_i32_1 = arith.constant 0 : i32
    %c0_i32_2 = arith.constant 0 : i32
    return %c0_i32, %c0_i32_0, %c0_i32_1 : i32, i32, i32
  }
}

</mosaic_0001>

<llo_original>
// kernel: tpu_custom_call.1
$region0: #{tpu_custom_call.1}
  #allocation0 [shape = 'u32[]', space=smem, size = 0x4, offset = 0x4, fixed_abs, tag = 'smem constant byte address 0x4 - core index']
  #allocation1 [shape = 'u32[144,128]{1,0:T(1,128)}', space=vmem, size = 0x12000, scoped, tag = 'internal scratch']
  %s0 = inlined_call_operand.hbm [shape: f32[2,8,32], index: 0, kind: input, shape index: {}]
  %s1 = inlined_call_operand.hbm [shape: f32[2,8,8], index: 1, kind: input, shape index: {}]
  %s2 = inlined_call_operand.hbm [shape: f32[32,48], index: 2, kind: input, shape index: {}]
  %s3 = inlined_call_operand.vmem [shape: f32[1,1,48], index: 3, kind: input, shape index: {}]
  %s4 = inlined_call_operand.hbm [shape: f32[2,8,16], index: 4, kind: output, shape index: {}]
  %s5 = sld [smem:[#allocation0]]
  $region38: #{tpu_custom_call.1} parent=0
    _
  %s7 = ssub.s32 1, %s5
  %s8 = scalar_select 0, %s7, %s5
  $region1: #{tpu_custom_call.1} parent=0
    #allocation2 [shape = 'u8[8192]{0}', space=vmem, size = 0x2000, scoped, tag = 'input window, operand 0, single buffered']
    #allocation3 [shape = 's32[1]{0}', space=sflag, size = 0x4, scoped, tag = 'scoped memory for tpu_custom_call.1']
    #allocation4 [shape = 's32[1]{0}', space=sflag, size = 0x4, scoped, tag = 'scoped memory for tpu_custom_call.1']
    #allocation5 [shape = 'u8[8192]{0}', space=vmem, size = 0x2000, scoped, tag = 'input window, operand 1, single buffered']
    #allocation6 [shape = 's32[1]{0}', space=sflag, size = 0x4, scoped, tag = 'scoped memory for tpu_custom_call.1']
    #allocation7 [shape = 'u8[16384]{0}', space=vmem, size = 0x4000, scoped, tag = 'input window, operand 2, single buffered']
    #allocation8 [shape = 'u8[8192]{0}', space=vmem, size = 0x2000, scoped, tag = 'output window, operand 0, single buffered']
    %9 = vsyncpa [#allocation3], 0
    %10 = vsyncpa [#allocation6], 0
    %11 = vsyncpa [#allocation4], 0
    // Predicated region
    $region2: #{tpu_custom_call.1} parent=1 // pred_check
      _
    $region3: #{tpu_custom_call.1} parent=1 // pred_check_branch
      %13 = sbr.rel (0) target = $region5
    $region4: #{tpu_custom_call.1} parent=1 // pred_region
      %s15 = ssub.s32 256, 256
      %16 = vsyncadd [#allocation3], %s15
      %s17 = sshll.u32 [#allocation2], 4
      %s18 = int_to_ptr.vmem [resolvable:$true] %s17
      %23 = dma.hbm_to_vmem [thread:$0]  %s0, 256, %s18, [#allocation3], 128, 128, 8
    $region5: #{tpu_custom_call.1} parent=1 // pred_fallthru
      _
    // Predicated region
    $region6: #{tpu_custom_call.1} parent=1 // pred_check
      _
    $region7: #{tpu_custom_call.1} parent=1 // pred_check_branch
      %25 = sbr.rel (0) target = $region9
    $region8: #{tpu_custom_call.1} parent=1 // pred_region
      %s27 = ssub.s32 256, 256
      %28 = vsyncadd [#allocation6], %s27
      %s29 = sshll.u32 [#allocation5], 4
      %s30 = int_to_ptr.vmem [resolvable:$true] %s29
      %35 = dma.hbm_to_vmem [thread:$0]  %s1, 256, %s30, [#allocation6], 128, 128, 8
    $region9: #{tpu_custom_call.1} parent=1 // pred_fallthru
      _
    // Predicated region
    $region10: #{tpu_custom_call.1} parent=1 // pred_check
      _
    $region11: #{tpu_custom_call.1} parent=1 // pred_check_branch
      %37 = sbr.rel (0) target = $region13
    $region12: #{tpu_custom_call.1} parent=1 // pred_region
      %s39 = ssub.s32 512, 512
      %40 = vsyncadd [#allocation6], %s39
      %s41 = sshll.u32 [#allocation7], 4
      %s42 = int_to_ptr.vmem [resolvable:$true] %s41
      %47 = dma.hbm_to_vmem [thread:$0]  %s2, 512, %s42, [#allocation6], 128, 128, 8
    $region13: #{tpu_custom_call.1} parent=1 // pred_fallthru
      _
    // Predicated region
    $region14: #{tpu_custom_call.1} parent=1 // pred_check
      _
    $region15: #{tpu_custom_call.1} parent=1 // pred_check_branch
      %49 = sbr.rel (0) target = $region17
    $region16: #{tpu_custom_call.1} parent=1 // pred_region
      _
    $region17: #{tpu_custom_call.1} parent=1 // pred_fallthru
      _
    // Predicated region
    $region18: #{tpu_custom_call.1} parent=1 // pred_check
      _
    $region19: #{tpu_custom_call.1} parent=1 // pred_check_branch
      %51 = sbr.rel (0) target = $region21
    $region20: #{tpu_custom_call.1} parent=1 // pred_region
      %52 = dma.done [#allocation3], 256
    $region21: #{tpu_custom_call.1} parent=1 // pred_fallthru
      _
    // Predicated region
    $region22: #{tpu_custom_call.1} parent=1 // pred_check
      _
    $region23: #{tpu_custom_call.1} parent=1 // pred_check_branch
      %54 = sbr.rel (0) target = $region25
    $region24: #{tpu_custom_call.1} parent=1 // pred_region
      %55 = dma.done [#allocation6], 256
    $region25: #{tpu_custom_call.1} parent=1 // pred_fallthru
      _
    // Predicated region
    $region26: #{tpu_custom_call.1} parent=1 // pred_check
      _
    $region27: #{tpu_custom_call.1} parent=1 // pred_check_branch
      %57 = sbr.rel (0) target = $region29
    $region28: #{tpu_custom_call.1} parent=1 // pred_region
      %58 = dma.done [#allocation6], 512
    $region29: #{tpu_custom_call.1} parent=1 // pred_fallthru
      _
    %v59 = vld [vmem:[#allocation2] sm:$0xff]
    %v60 = vld [vmem:[#allocation2 + $0x8] sm:$0xff]
    %v61 = vld [vmem:[#allocation7] sm:$0xff]
    %v62 = vld [vmem:[#allocation7 + $0x8] sm:$0xff]
    %v63 = vld [vmem:[#allocation7 + $0x10] sm:$0xff]
    %v64 = vld [vmem:[#allocation7 + $0x18] sm:$0xff]
    %v65 = vld [vmem:[%s3] sm:$0x1]
    %v67 = vlaneseq
    %v68 = vshrl.u32 %v67, 7
    %v69 = vsub.s32 0, %v68
    %v70 = vrot.slane %v65, %v69
    %vm72 = vcmask 261120
    %v74 = vsel %vm72, %v59, 0
    %v77 = vsel %vm72, %v60, 0
    %79 = vmatprep.subr.mxu0 0.0
    %80 = vmatpush1.msra.mxu0 %v61
    %81 = vmatprep.subr.mxu0 0.0
    %82 = vmatpush1.msra.mxu0 %v62
    %83 = vmatprep.subr.mxu0 0.0
    %84 = vmatpush1.msra.mxu0 %v63
    %85 = vmatprep.subr.mxu0 0.0
    %86 = vmatpush1.msra.mxu0 %v64
    %87 = vmatprep.subr.mxu0 0.0
    %88 = vmatpush1.msra.mxu0 0.0
    %89 = vmatprep.subr.mxu0 0.0
    %90 = vmatpush1.msra.mxu0 0.0
    %91 = vmatprep.subr.mxu0 0.0
    %92 = vmatpush1.msra.mxu0 0.0
    %93 = vmatprep.subr.mxu0 0.0
    %94 = vmatpush1.msra.mxu0 0.0
    %95 = vmatprep.subr.mxu0 0.0
    %96 = vmatpush1.msra.mxu0 0.0
    %97 = vmatprep.subr.mxu0 0.0
    %98 = vmatpush1.msra.mxu0 0.0
    %99 = vmatprep.subr.mxu0 0.0
    %100 = vmatpush1.msra.mxu0 0.0
    %101 = vmatprep.subr.mxu0 0.0
    %102 = vmatpush1.msra.mxu0 0.0
    %103 = vmatprep.subr.mxu0 0.0
    %104 = vmatpush1.msra.mxu0 0.0
    %105 = vmatprep.subr.mxu0 0.0
    %106 = vmatpush1.msra.mxu0 0.0
    %107 = vmatprep.subr.mxu0 0.0
    %108 = vmatpush1.msra.mxu0 0.0
    %109 = vmatprep.subr.mxu0 0.0
    %110 = vmatpush1.msra.mxu0 0.0
    %111 = vmatprep.subr.mxu0 0.0
    %112 = vmatpush1.msra.mxu0 0.0
    %113 = vmatprep.subr.mxu0 0.0
    %114 = vmatpush1.msra.mxu0 0.0
    %115 = vmatprep.subr.mxu0 0.0
    %116 = vmatpush1.msra.mxu0 0.0
    %117 = vmatprep.subr.mxu0 0.0
    %118 = vmatpush1.msra.mxu0 0.0
    %119 = vmatprep.subr.mxu0 0.0
    %120 = vmatpush1.msra.mxu0 0.0
    %121 = vmatprep.subr.mxu0 0.0
    %122 = vmatpush1.msra.mxu0 0.0
    %123 = vmatprep.subr.mxu0 0.0
    %124 = vmatpush1.msra.mxu0 0.0
    %125 = vmatprep.subr.mxu0 0.0
    %126 = vmatpush1.msra.mxu0 0.0
    %127 = vmatprep.subr.mxu0 0.0
    %128 = vmatpush1.msra.mxu0 0.0
    %129 = vmatprep.subr.mxu0 0.0
    %130 = vmatpush1.msra.mxu0 0.0
    %131 = vmatprep.subr.mxu0 0.0
    %132 = vmatpush1.msra.mxu0 0.0
    %133 = vmatprep.subr.mxu0 0.0
    %134 = vmatpush1.msra.mxu0 0.0
    %135 = vmatprep.subr.mxu0 0.0
    %136 = vmatpush1.msra.mxu0 0.0
    %137 = vmatprep.subr.mxu0 0.0
    %138 = vmatpush1.msra.mxu0 0.0
    %139 = vmatprep.subr.mxu0 0.0
    %140 = vmatpush1.msra.mxu0 0.0
    %141 = vmatprep.subr.mxu0 0.0
    %142 = vmatpush1.msra.mxu0 0.0
    %143 = vmatprep.mubr.f32.mxu0 0.0
    %144 = vmatmul.mubr.f32.gmra.mrb[0].mxu0 %v74
    %v145 = vpop.f32.mrb[0].mxu0
    %v146 = vadd.f32 %v70, %v145
    %v147 = vpop.f32.mrb[0].mxu0
    %148 = vmatprep.mubr.f32.mxu0 0.0
    %149 = vmatmul.mubr.f32.gmra.mrb[0].mxu0 %v77
    %v150 = vpop.f32.mrb[0].mxu0
    %v151 = vadd.f32 %v70, %v150
    %v152 = vpop.f32.mrb[0].mxu0
    %153 = vdwg.mxu0
    %v154 = vld [vmem:[#allocation5] sm:$0xff]
    %v155 = vld [vmem:[#allocation5 + $0x8] sm:$0xff]
    %157 = vrot.lane.b32.xlu0 %v146, 112
    %v158 = vpop.permute.xlu0 %157
    %vm159 = vcmask 130048
    %v160 = vsel %vm159, %v146, 0
    %v162 = vsel %vm159, %v158, 0
    %164 = vmatprep.subr.mxu0 0.0
    %165 = vmatpush1.xpose.msra.mxu0 %v162
    %166 = vmatprep.subr.mxu0 0.0
    %167 = vmatpush1.xpose.msra.mxu0 0.0
    %168 = vmatprep.subr.mxu0 0.0
    %169 = vmatpush1.xpose.msra.mxu0 0.0
    %170 = vmatprep.subr.mxu0 0.0
    %171 = vmatpush1.xpose.msra.mxu0 0.0
    %172 = vmatprep.subr.mxu0 0.0
    %173 = vmatpush1.xpose.msra.mxu0 0.0
    %174 = vmatprep.subr.mxu0 0.0
    %175 = vmatpush1.xpose.msra.mxu0 0.0
    %176 = vmatprep.subr.mxu0 0.0
    %177 = vmatpush1.xpose.msra.mxu0 0.0
    %178 = vmatprep.subr.mxu0 0.0
    %179 = vmatpush1.xpose.msra.mxu0 0.0
    %180 = vmatprep.subr.mxu0 0.0
    %181 = vmatpush1.xpose.msra.mxu0 0.0
    %182 = vmatprep.subr.mxu0 0.0
    %183 = vmatpush1.xpose.msra.mxu0 0.0
    %184 = vmatprep.subr.mxu0 0.0
    %185 = vmatpush1.xpose.msra.mxu0 0.0
    %186 = vmatprep.subr.mxu0 0.0
    %187 = vmatpush1.xpose.msra.mxu0 0.0
    %188 = vmatprep.subr.mxu0 0.0
    %189 = vmatpush1.xpose.msra.mxu0 0.0
    %190 = vmatprep.subr.mxu0 0.0
    %191 = vmatpush1.xpose.msra.mxu0 0.0
    %192 = vmatprep.subr.mxu0 0.0
    %193 = vmatpush1.xpose.msra.mxu0 0.0
    %194 = vmatprep.subr.mxu0 0.0
    %195 = vmatpush1.xpose.msra.mxu0 0.0
    %196 = vmatprep.subr.mxu0 0.0
    %197 = vmatpush1.xpose.msra.mxu0 0.0
    %198 = vmatprep.subr.mxu0 0.0
    %199 = vmatpush1.xpose.msra.mxu0 0.0
    %200 = vmatprep.subr.mxu0 0.0
    %201 = vmatpush1.xpose.msra.mxu0 0.0
    %202 = vmatprep.subr.mxu0 0.0
    %203 = vmatpush1.xpose.msra.mxu0 0.0
    %204 = vmatprep.subr.mxu0 0.0
    %205 = vmatpush1.xpose.msra.mxu0 0.0
    %206 = vmatprep.subr.mxu0 0.0
    %207 = vmatpush1.xpose.msra.mxu0 0.0
    %208 = vmatprep.subr.mxu0 0.0
    %209 = vmatpush1.xpose.msra.mxu0 0.0
    %210 = vmatprep.subr.mxu0 0.0
    %211 = vmatpush1.xpose.msra.mxu0 0.0
    %212 = vmatprep.subr.mxu0 0.0
    %213 = vmatpush1.xpose.msra.mxu0 0.0
    %214 = vmatprep.subr.mxu0 0.0
    %215 = vmatpush1.xpose.msra.mxu0 0.0
    %216 = vmatprep.subr.mxu0 0.0
    %217 = vmatpush1.xpose.msra.mxu0 0.0
    %218 = vmatprep.subr.mxu0 0.0
    %219 = vmatpush1.xpose.msra.mxu0 0.0
    %220 = vmatprep.subr.mxu0 0.0
    %221 = vmatpush1.xpose.msra.mxu0 0.0
    %222 = vmatprep.subr.mxu0 0.0
    %223 = vmatpush1.xpose.msra.mxu0 0.0
    %224 = vmatprep.subr.mxu0 0.0
    %225 = vmatpush1.xpose.msra.mxu0 0.0
    %226 = vmatprep.subr.mxu0 0.0
    %227 = vmatpush1.xpose.msra.mxu0 0.0
    %228 = vmatprep.mubr.f32.mxu0 0.0
    %229 = vmatmul.mubr.f32.gmra.mrb[0].mxu0 %v160
    %v230 = vpop.f32.mrb[0].mxu0
    %v231 = vadd.f32 %v154, %v230
    %v232 = vpop.f32.mrb[0].mxu0
    %233 = vdwg.mxu0
    %235 = vrot.lane.b32.xlu0 %v151, 112
    %v236 = vpop.permute.xlu0 %235
    %v237 = vsel %vm159, %v151, 0
    %v239 = vsel %vm159, %v236, 0
    %241 = vmatprep.subr.mxu0 0.0
    %242 = vmatpush1.xpose.msra.mxu0 %v239
    %243 = vmatprep.subr.mxu0 0.0
    %244 = vmatpush1.xpose.msra.mxu0 0.0
    %245 = vmatprep.subr.mxu0 0.0
    %246 = vmatpush1.xpose.msra.mxu0 0.0
    %247 = vmatprep.subr.mxu0 0.0
    %248 = vmatpush1.xpose.msra.mxu0 0.0
    %249 = vmatprep.subr.mxu0 0.0
    %250 = vmatpush1.xpose.msra.mxu0 0.0
    %251 = vmatprep.subr.mxu0 0.0
    %252 = vmatpush1.xpose.msra.mxu0 0.0
    %253 = vmatprep.subr.mxu0 0.0
    %254 = vmatpush1.xpose.msra.mxu0 0.0
    %255 = vmatprep.subr.mxu0 0.0
    %256 = vmatpush1.xpose.msra.mxu0 0.0
    %257 = vmatprep.subr.mxu0 0.0
    %258 = vmatpush1.xpose.msra.mxu0 0.0
    %259 = vmatprep.subr.mxu0 0.0
    %260 = vmatpush1.xpose.msra.mxu0 0.0
    %261 = vmatprep.subr.mxu0 0.0
    %262 = vmatpush1.xpose.msra.mxu0 0.0
    %263 = vmatprep.subr.mxu0 0.0
    %264 = vmatpush1.xpose.msra.mxu0 0.0
    %265 = vmatprep.subr.mxu0 0.0
    %266 = vmatpush1.xpose.msra.mxu0 0.0
    %267 = vmatprep.subr.mxu0 0.0
    %268 = vmatpush1.xpose.msra.mxu0 0.0
    %269 = vmatprep.subr.mxu0 0.0
    %270 = vmatpush1.xpose.msra.mxu0 0.0
    %271 = vmatprep.subr.mxu0 0.0
    %272 = vmatpush1.xpose.msra.mxu0 0.0
    %273 = vmatprep.subr.mxu0 0.0
    %274 = vmatpush1.xpose.msra.mxu0 0.0
    %275 = vmatprep.subr.mxu0 0.0
    %276 = vmatpush1.xpose.msra.mxu0 0.0
    %277 = vmatprep.subr.mxu0 0.0
    %278 = vmatpush1.xpose.msra.mxu0 0.0
    %279 = vmatprep.subr.mxu0 0.0
    %280 = vmatpush1.xpose.msra.mxu0 0.0
    %281 = vmatprep.subr.mxu0 0.0
    %282 = vmatpush1.xpose.msra.mxu0 0.0
    %283 = vmatprep.subr.mxu0 0.0
    %284 = vmatpush1.xpose.msra.mxu0 0.0
    %285 = vmatprep.subr.mxu0 0.0
    %286 = vmatpush1.xpose.msra.mxu0 0.0
    %287 = vmatprep.subr.mxu0 0.0
    %288 = vmatpush1.xpose.msra.mxu0 0.0
    %289 = vmatprep.subr.mxu0 0.0
    %290 = vmatpush1.xpose.msra.mxu0 0.0
    %291 = vmatprep.subr.mxu0 0.0
    %292 = vmatpush1.xpose.msra.mxu0 0.0
    %293 = vmatprep.subr.mxu0 0.0
    %294 = vmatpush1.xpose.msra.mxu0 0.0
    %295 = vmatprep.subr.mxu0 0.0
    %296 = vmatpush1.xpose.msra.mxu0 0.0
    %297 = vmatprep.subr.mxu0 0.0
    %298 = vmatpush1.xpose.msra.mxu0 0.0
    %299 = vmatprep.subr.mxu0 0.0
    %300 = vmatpush1.xpose.msra.mxu0 0.0
    %301 = vmatprep.subr.mxu0 0.0
    %302 = vmatpush1.xpose.msra.mxu0 0.0
    %303 = vmatprep.subr.mxu0 0.0
    %304 = vmatpush1.xpose.msra.mxu0 0.0
    %305 = vmatprep.mubr.f32.mxu0 0.0
    %306 = vmatmul.mubr.f32.gmra.mrb[0].mxu0 %v237
    %v307 = vpop.f32.mrb[0].mxu0
    %v308 = vadd.f32 %v155, %v307
    %v309 = vpop.f32.mrb[0].mxu0
    %310 = vdwg.mxu0
    %vm311 = vcmask 64512
    %v312 = vsel %vm311, %v231, -inf
    %313 = vmax.xlane.f32.xlu0 %v312
    %v314 = vpop.xlane.xlu0 %313
    %v315 = vsel %vm311, %v308, -inf
    %316 = vmax.xlane.f32.xlu0 %v315
    %v317 = vpop.xlane.xlu0 %316
    %v318 = vsub.f32 %v231, %v314
    %v319 = vsub.f32 %v308, %v317
    %v320 = vmul.f32 %v318, 1.442695
    %v321 = vpow.pop %v320
    %v322 = vmul.f32 %v319, 1.442695
    %v323 = vpow.pop %v322
    %v324 = vsel %vm311, %v321, 0.0
    %325 = vadd.xlane.f32.xlu0 %v324
    %v326 = vpop.xlane.xlu0 %325
    %v327 = vsel %vm311, %v323, 0.0
    %328 = vadd.xlane.f32.xlu0 %v327
    %v329 = vpop.xlane.xlu0 %328
    %v330 = vrcp.pop %v326
    %v331 = vrcp.pop %v329
    %v332 = vmul.f32 %v326, %v330
    %v333 = vmul.f32 %v329, %v331
    %v334 = vsub.f32 2.0, %v332
    %v335 = vsub.f32 2.0, %v333
    %v336 = vmul.f32 %v330, %v334
    %v337 = vmul.f32 %v331, %v335
    %v338 = vmul.f32 %v321, %v336
    %v339 = vmul.f32 %v323, %v337
    %340 = vrot.lane.b32.xlu0 %v146, 96
    %v341 = vpop.permute.xlu0 %340
    %v344 = vsel %vm311, %v338, 0
    %346 = vmatprep.subr.mxu0 0.0
    %347 = vmatpush1.msra.mxu0 %v341
    %348 = vmatprep.subr.mxu0 0.0
    %349 = vmatpush1.msra.mxu0 0.0
    %350 = vmatprep.subr.mxu0 0.0
    %351 = vmatpush1.msra.mxu0 0.0
    %352 = vmatprep.subr.mxu0 0.0
    %353 = vmatpush1.msra.mxu0 0.0
    %354 = vmatprep.subr.mxu0 0.0
    %355 = vmatpush1.msra.mxu0 0.0
    %356 = vmatprep.subr.mxu0 0.0
    %357 = vmatpush1.msra.mxu0 0.0
    %358 = vmatprep.subr.mxu0 0.0
    %359 = vmatpush1.msra.mxu0 0.0
    %360 = vmatprep.subr.mxu0 0.0
    %361 = vmatpush1.msra.mxu0 0.0
    %362 = vmatprep.subr.mxu0 0.0
    %363 = vmatpush1.msra.mxu0 0.0
    %364 = vmatprep.subr.mxu0 0.0
    %365 = vmatpush1.msra.mxu0 0.0
    %366 = vmatprep.subr.mxu0 0.0
    %367 = vmatpush1.msra.mxu0 0.0
    %368 = vmatprep.subr.mxu0 0.0
    %369 = vmatpush1.msra.mxu0 0.0
    %370 = vmatprep.subr.mxu0 0.0
    %371 = vmatpush1.msra.mxu0 0.0
    %372 = vmatprep.subr.mxu0 0.0
    %373 = vmatpush1.msra.mxu0 0.0
    %374 = vmatprep.subr.mxu0 0.0
    %375 = vmatpush1.msra.mxu0 0.0
    %376 = vmatprep.subr.mxu0 0.0
    %377 = vmatpush1.msra.mxu0 0.0
    %378 = vmatprep.subr.mxu0 0.0
    %379 = vmatpush1.msra.mxu0 0.0
    %380 = vmatprep.subr.mxu0 0.0
    %381 = vmatpush1.msra.mxu0 0.0
    %382 = vmatprep.subr.mxu0 0.0
    %383 = vmatpush1.msra.mxu0 0.0
    %384 = vmatprep.subr.mxu0 0.0
    %385 = vmatpush1.msra.mxu0 0.0
    %386 = vmatprep.subr.mxu0 0.0
    %387 = vmatpush1.msra.mxu0 0.0
    %388 = vmatprep.subr.mxu0 0.0
    %389 = vmatpush1.msra.mxu0 0.0
    %390 = vmatprep.subr.mxu0 0.0
    %391 = vmatpush1.msra.mxu0 0.0
    %392 = vmatprep.subr.mxu0 0.0
    %393 = vmatpush1.msra.mxu0 0.0
    %394 = vmatprep.subr.mxu0 0.0
    %395 = vmatpush1.msra.mxu0 0.0
    %396 = vmatprep.subr.mxu0 0.0
    %397 = vmatpush1.msra.mxu0 0.0
    %398 = vmatprep.subr.mxu0 0.0
    %399 = vmatpush1.msra.mxu0 0.0
    %400 = vmatprep.subr.mxu0 0.0
    %401 = vmatpush1.msra.mxu0 0.0
    %402 = vmatprep.subr.mxu0 0.0
    %403 = vmatpush1.msra.mxu0 0.0
    %404 = vmatprep.subr.mxu0 0.0
    %405 = vmatpush1.msra.mxu0 0.0
    %406 = vmatprep.subr.mxu0 0.0
    %407 = vmatpush1.msra.mxu0 0.0
    %408 = vmatprep.subr.mxu0 0.0
    %409 = vmatpush1.msra.mxu0 0.0
    %410 = vmatprep.mubr.f32.mxu0 0.0
    %411 = vmatmul.mubr.f32.gmra.mrb[0].mxu0 %v344
    %v412 = vpop.f32.mrb[0].mxu0
    %v413 = vadd.f32 0.0, %v412
    %v414 = vpop.f32.mrb[0].mxu0
    %415 = vdwg.mxu0
    %416 = vrot.lane.b32.xlu0 %v151, 96
    %v417 = vpop.permute.xlu0 %416
    %v420 = vsel %vm311, %v339, 0
    %422 = vmatprep.subr.mxu0 0.0
    %423 = vmatpush1.msra.mxu0 %v417
    %424 = vmatprep.subr.mxu0 0.0
    %425 = vmatpush1.msra.mxu0 0.0
    %426 = vmatprep.subr.mxu0 0.0
    %427 = vmatpush1.msra.mxu0 0.0
    %428 = vmatprep.subr.mxu0 0.0
    %429 = vmatpush1.msra.mxu0 0.0
    %430 = vmatprep.subr.mxu0 0.0
    %431 = vmatpush1.msra.mxu0 0.0
    %432 = vmatprep.subr.mxu0 0.0
    %433 = vmatpush1.msra.mxu0 0.0
    %434 = vmatprep.subr.mxu0 0.0
    %435 = vmatpush1.msra.mxu0 0.0
    %436 = vmatprep.subr.mxu0 0.0
    %437 = vmatpush1.msra.mxu0 0.0
    %438 = vmatprep.subr.mxu0 0.0
    %439 = vmatpush1.msra.mxu0 0.0
    %440 = vmatprep.subr.mxu0 0.0
    %441 = vmatpush1.msra.mxu0 0.0
    %442 = vmatprep.subr.mxu0 0.0
    %443 = vmatpush1.msra.mxu0 0.0
    %444 = vmatprep.subr.mxu0 0.0
    %445 = vmatpush1.msra.mxu0 0.0
    %446 = vmatprep.subr.mxu0 0.0
    %447 = vmatpush1.msra.mxu0 0.0
    %448 = vmatprep.subr.mxu0 0.0
    %449 = vmatpush1.msra.mxu0 0.0
    %450 = vmatprep.subr.mxu0 0.0
    %451 = vmatpush1.msra.mxu0 0.0
    %452 = vmatprep.subr.mxu0 0.0
    %453 = vmatpush1.msra.mxu0 0.0
    %454 = vmatprep.subr.mxu0 0.0
    %455 = vmatpush1.msra.mxu0 0.0
    %456 = vmatprep.subr.mxu0 0.0
    %457 = vmatpush1.msra.mxu0 0.0
    %458 = vmatprep.subr.mxu0 0.0
    %459 = vmatpush1.msra.mxu0 0.0
    %460 = vmatprep.subr.mxu0 0.0
    %461 = vmatpush1.msra.mxu0 0.0
    %462 = vmatprep.subr.mxu0 0.0
    %463 = vmatpush1.msra.mxu0 0.0
    %464 = vmatprep.subr.mxu0 0.0
    %465 = vmatpush1.msra.mxu0 0.0
    %466 = vmatprep.subr.mxu0 0.0
    %467 = vmatpush1.msra.mxu0 0.0
    %468 = vmatprep.subr.mxu0 0.0
    %469 = vmatpush1.msra.mxu0 0.0
    %470 = vmatprep.subr.mxu0 0.0
    %471 = vmatpush1.msra.mxu0 0.0
    %472 = vmatprep.subr.mxu0 0.0
    %473 = vmatpush1.msra.mxu0 0.0
    %474 = vmatprep.subr.mxu0 0.0
    %475 = vmatpush1.msra.mxu0 0.0
    %476 = vmatprep.subr.mxu0 0.0
    %477 = vmatpush1.msra.mxu0 0.0
    %478 = vmatprep.subr.mxu0 0.0
    %479 = vmatpush1.msra.mxu0 0.0
    %480 = vmatprep.subr.mxu0 0.0
    %481 = vmatpush1.msra.mxu0 0.0
    %482 = vmatprep.subr.mxu0 0.0
    %483 = vmatpush1.msra.mxu0 0.0
    %484 = vmatprep.subr.mxu0 0.0
    %485 = vmatpush1.msra.mxu0 0.0
    %486 = vmatprep.mubr.f32.mxu0 0.0
    %487 = vmatmul.mubr.f32.gmra.mrb[0].mxu0 %v420
    %v488 = vpop.f32.mrb[0].mxu0
    %v489 = vadd.f32 0.0, %v488
    %v490 = vpop.f32.mrb[0].mxu0
    %491 = vdwg.mxu0
    %492 = vst.msk [vmem:[#allocation8] sm:$0xff] %vm159, %v413
    %493 = vst.msk [vmem:[#allocation8 + $0x8] sm:$0xff] %vm159, %v489
    // Predicated region
    $region30: #{tpu_custom_call.1} parent=1 // pred_check
      _
    $region31: #{tpu_custom_call.1} parent=1 // pred_check_branch
      %495 = sbr.rel (0) target = $region33
    $region32: #{tpu_custom_call.1} parent=1 // pred_region
      %s497 = ssub.s32 256, 256
      %498 = vsyncadd [#allocation4], %s497
      %s499 = sshll.u32 [#allocation8], 4
      %s500 = int_to_ptr.vmem [resolvable:$true] %s499
      %505 = dma.vmem_to_hbm [thread:$0]  %s500, 256, %s4, [#allocation4], 128, 128, 8
    $region33: #{tpu_custom_call.1} parent=1 // pred_fallthru
      _
    // Predicated region
    $region34: #{tpu_custom_call.1} parent=1 // pred_check
      _
    $region35: #{tpu_custom_call.1} parent=1 // pred_check_branch
      %507 = sbr.rel (0) target = $region37
    $region36: #{tpu_custom_call.1} parent=1 // pred_region
      %508 = dma.done [#allocation4], 256
    $region37: #{tpu_custom_call.1} parent=1 // pred_fallthru
      _
    %509 = vsyncpa [#allocation3], 1
    %510 = vsyncpa [#allocation6], 1
    %511 = vsyncpa [#allocation4], 1

</llo_original>
